<compile_context>
chip_gen: v6e
topology: v6e:2x2x1
jax: 0.10.0
libtpu: 0.0.40
codegen_flags: <defaults>
</compile_context>

<pallas_src>
import jax
import jax.numpy as jnp
from jax.experimental import pallas as pl
from jax.experimental.pallas import tpu as pltpu

NX = 3    # Conv1D(5, 3) input features
NF1 = 5   # hidden features
NF2 = 5   # output features

LANES = 512                        # lane width of the token slab (multiple of 128)
SUBLANES = 8
TOKEN_QUANTUM = SUBLANES * LANES   # 4096 tokens = one minimal dense (8, 512) slab
TILE_TOKENS = 131072               # default tokens per grid step (~4 MiB/step HBM traffic)
MAX_TILE_TOKENS = 262144           # keep double-buffered VMEM footprint <= ~16 MiB


def _round_up(a, b):
    return ((a + b - 1) // b) * b


def _hf_mlp_kernel(x_ref, w1_ref, b1_ref, w2_ref, b2_ref, o_ref):
    # x_ref : (NX,  TR, LANES) VMEM — tokens laid out densely on (sublane, lane)
    # w1_ref: (NX,  NF1)       SMEM (scalar reads)
    # b1_ref: (NF1,)           SMEM
    # w2_ref: (NF1, NF2)       SMEM
    # b2_ref: (NF2,)           SMEM
    # o_ref : (NF2, TR, LANES) VMEM
    x_slabs = [x_ref[k] for k in range(NX)]            # each (TR, LANES) f32

    # Layer 1: h[f] = relu(sum_k w1[k,f] * x[k] + b1[f])   (unrolled VPU FMAs)
    h_slabs = []
    for f in range(NF1):
        acc = x_slabs[0] * w1_ref[0, f]
        for k in range(1, NX):
            acc = acc + x_slabs[k] * w1_ref[k, f]
        acc = acc + b1_ref[f]
        h_slabs.append(jnp.maximum(acc, 0.0))

    # Layer 2: y[g] = sum_f w2[f,g] * h[f] + b2[g]
    for g in range(NF2):
        acc = h_slabs[0] * w2_ref[0, g]
        for f in range(1, NF1):
            acc = acc + h_slabs[f] * w2_ref[f, g]
        acc = acc + b2_ref[g]
        o_ref[g] = acc.astype(o_ref.dtype)              # full-width unmasked store


def hf_model_forward(x, w1, b1, w2, b2, *, tile_tokens=TILE_TOKENS):
    """x: (..., 3) float32 -> (..., 5) float32, matching HFModel.forward."""
    orig_shape = x.shape
    assert orig_shape[-1] == NX
    nf2 = w2.shape[-1]

    x2d = x.reshape(-1, NX).astype(jnp.float32)
    m = x2d.shape[0]

    # --- tile selection (tokens per grid step) ----------------------------
    tile_tokens = int(min(max(_round_up(int(tile_tokens), TOKEN_QUANTUM),
                              TOKEN_QUANTUM),
                          MAX_TILE_TOKENS))
    m_pad0 = _round_up(m, TOKEN_QUANTUM)
    # v7x: keep >= 2 grid steps when there is enough work so both TensorCores
    # of a chip can split the "parallel" axis.
    if m_pad0 >= 2 * TOKEN_QUANTUM:
        half = _round_up(-(-m_pad0 // 2), TOKEN_QUANTUM)
        tile_tokens = min(tile_tokens, half)
    tile_tokens = min(tile_tokens, m_pad0)
    m_pad = _round_up(m, tile_tokens)

    rows_total = m_pad // LANES            # multiple of 8
    tr = tile_tokens // LANES              # rows per grid step, multiple of 8
    grid = (rows_total // tr,)

    # --- dense layout: (NX, rows_total, LANES); pad+transpose+reshape is one
    # fused copy under XLA. ------------------------------------------------
    xp = jnp.pad(x2d, ((0, m_pad - m), (0, 0)))          # (m_pad, NX)
    xt = xp.T.reshape(NX, rows_total, LANES)             # (NX, R, LANES)
    # TODO(synk): keeping the (features, tokens) layout across the surrounding
    # graph (folding these transposes into producer/consumer) would remove the
    # extra HBM passes entirely.

    cost = pl.CostEstimate(
        flops=2 * m_pad * (NX * NF1 + NF1 * NF2),
        transcendentals=0,
        bytes_accessed=m_pad * (NX + NF2) * 4
        + (NX * NF1 + NF1 + NF1 * NF2 + NF2) * 4,
    )

    out_t = pl.pallas_call(
        _hf_mlp_kernel,
        out_shape=jax.ShapeDtypeStruct((NF2, rows_total, LANES), jnp.float32),
        grid=grid,
        in_specs=[
            pl.BlockSpec((NX, tr, LANES), lambda i: (0, i, 0)),
            pl.BlockSpec(memory_space=pltpu.MemorySpace.SMEM),  # w1 (3,5)
            pl.BlockSpec(memory_space=pltpu.MemorySpace.SMEM),  # b1 (5,)
            pl.BlockSpec(memory_space=pltpu.MemorySpace.SMEM),  # w2 (5,5)
            pl.BlockSpec(memory_space=pltpu.MemorySpace.SMEM),  # b2 (5,)
        ],
        out_specs=pl.BlockSpec((NF2, tr, LANES), lambda i: (0, i, 0)),
        compiler_params=pltpu.CompilerParams(
            dimension_semantics=("parallel",),
            # Safe on all chips (<= v7x's 64 MiB physical); gives headroom over
            # v5e's 16 MiB scoped default for the ~8 MiB double-buffered tiles.
            vmem_limit_bytes=32 * 1024 * 1024,
        ),
        cost_estimate=cost,
    )(xt, w1, b1, w2, b2)

    out = out_t.reshape(NF2, m_pad)[:, :m].T             # (M, NF2)
    return out.reshape(orig_shape[:-1] + (nf2,)).astype(x.dtype)


def init_params(key):
    # transformers Conv1D init: weight ~ N(0, 0.02), bias = 0
    k1, k2 = jax.random.split(key)
    w1 = (0.02 * jax.random.normal(k1, (NX, NF1))).astype(jnp.float32)   # Conv1D(5, 3)
    b1 = jnp.zeros((NF1,), dtype=jnp.float32)
    w2 = (0.02 * jax.random.normal(k2, (NF1, NF2))).astype(jnp.float32)  # Conv1D(5, 5)
    b2 = jnp.zeros((NF2,), dtype=jnp.float32)
    return w1, b1, w2, b2


def reference_forward(x, w1, b1, w2, b2):
    h = jnp.maximum(x @ w1 + b1, 0.0)
    return h @ w2 + b2


if __name__ == "__main__":
    key = jax.random.PRNGKey(0)
    kx, kp = jax.random.split(key)

    # Small input consistent with Conv1D(5, 3): last dim must be 3.
    batch, seq = 2, 8
    x = jax.random.normal(kx, (batch, seq, NX), dtype=jnp.float32)

    # Use nonzero biases so the bias path is actually exercised.
    w1, b1, w2, b2 = init_params(kp)
    b1 = b1 + 0.01
    b2 = b2 - 0.02

    out = hf_model_forward(x, w1, b1, w2, b2)
    out = jax.block_until_ready(out)

    ref = reference_forward(x, w1, b1, w2, b2)
    assert out.shape == (batch, seq, NF2), out.shape
    assert jnp.allclose(out, ref, atol=1e-5, rtol=1e-5), "mismatch vs reference"

    print("KERNEL_OK")
</pallas_src>

<mosaic_0001>
module attributes {stable_mosaic.version = 11 : i64} {
  func.func @_hf_mlp_kernel(%arg0: i32, %arg1: memref<3x8x512xf32, #tpu.memory_space<vmem>>, %arg2: memref<3x5xf32, #tpu.memory_space<smem>>, %arg3: memref<5xf32, #tpu.memory_space<smem>>, %arg4: memref<5x5xf32, #tpu.memory_space<smem>>, %arg5: memref<5xf32, #tpu.memory_space<smem>>, %arg6: memref<5x8x512xf32, #tpu.memory_space<vmem>>) attributes {dimension_semantics = [#tpu.dimension_semantics<parallel>], iteration_bounds = array<i64: 1>, scalar_prefetch = 0 : i64, scratch_operands = 0 : i64, tpu.core_type = #tpu.core_type<tc>, window_params = [{transform_indices = @transform_0, window_bounds = array<i64: 3, 8, 512>}, {transform_indices = @transform_1, window_bounds = array<i64: 3, 5>}, {transform_indices = @transform_2, window_bounds = array<i64: 5>}, {transform_indices = @transform_3, window_bounds = array<i64: 5, 5>}, {transform_indices = @transform_4, window_bounds = array<i64: 5>}, {transform_indices = @transform_5, window_bounds = array<i64: 5, 8, 512>}]} {
    %c0 = arith.constant 0 : index
    %c0_0 = arith.constant 0 : index
    %c0_1 = arith.constant 0 : index
    %0 = vector.load %arg1[%c0, %c0_0, %c0_1] : memref<3x8x512xf32, #tpu.memory_space<vmem>>, vector<1x8x512xf32>
    %1 = vector.shape_cast %0 : vector<1x8x512xf32> to vector<8x512xf32>
    %c1 = arith.constant 1 : index
    %c0_2 = arith.constant 0 : index
    %c0_3 = arith.constant 0 : index
    %2 = vector.load %arg1[%c1, %c0_2, %c0_3] : memref<3x8x512xf32, #tpu.memory_space<vmem>>, vector<1x8x512xf32>
    %3 = vector.shape_cast %2 : vector<1x8x512xf32> to vector<8x512xf32>
    %c2 = arith.constant 2 : index
    %c0_4 = arith.constant 0 : index
    %c0_5 = arith.constant 0 : index
    %4 = vector.load %arg1[%c2, %c0_4, %c0_5] : memref<3x8x512xf32, #tpu.memory_space<vmem>>, vector<1x8x512xf32>
    %5 = vector.shape_cast %4 : vector<1x8x512xf32> to vector<8x512xf32>
    %c0_6 = arith.constant 0 : index
    %c0_7 = arith.constant 0 : index
    %6 = memref.load %arg2[%c0_6, %c0_7] : memref<3x5xf32, #tpu.memory_space<smem>>
    %7 = vector.broadcast %6 : f32 to vector<8x512xf32>
    %8 = arith.mulf %1, %7 : vector<8x512xf32>
    %c1_8 = arith.constant 1 : index
    %c0_9 = arith.constant 0 : index
    %9 = memref.load %arg2[%c1_8, %c0_9] : memref<3x5xf32, #tpu.memory_space<smem>>
    %10 = vector.broadcast %9 : f32 to vector<8x512xf32>
    %11 = arith.mulf %3, %10 : vector<8x512xf32>
    %12 = arith.addf %8, %11 : vector<8x512xf32>
    %c2_10 = arith.constant 2 : index
    %c0_11 = arith.constant 0 : index
    %13 = memref.load %arg2[%c2_10, %c0_11] : memref<3x5xf32, #tpu.memory_space<smem>>
    %14 = vector.broadcast %13 : f32 to vector<8x512xf32>
    %15 = arith.mulf %5, %14 : vector<8x512xf32>
    %16 = arith.addf %12, %15 : vector<8x512xf32>
    %c0_12 = arith.constant 0 : index
    %17 = memref.load %arg3[%c0_12] : memref<5xf32, #tpu.memory_space<smem>>
    %18 = vector.broadcast %17 : f32 to vector<8x512xf32>
    %19 = arith.addf %16, %18 : vector<8x512xf32>
    %cst = arith.constant 0.000000e+00 : f32
    %20 = vector.broadcast %cst : f32 to vector<8x512xf32>
    %21 = arith.maximumf %19, %20 : vector<8x512xf32>
    %c0_13 = arith.constant 0 : index
    %c1_14 = arith.constant 1 : index
    %22 = memref.load %arg2[%c0_13, %c1_14] : memref<3x5xf32, #tpu.memory_space<smem>>
    %23 = vector.broadcast %22 : f32 to vector<8x512xf32>
    %24 = arith.mulf %1, %23 : vector<8x512xf32>
    %c1_15 = arith.constant 1 : index
    %c1_16 = arith.constant 1 : index
    %25 = memref.load %arg2[%c1_15, %c1_16] : memref<3x5xf32, #tpu.memory_space<smem>>
    %26 = vector.broadcast %25 : f32 to vector<8x512xf32>
    %27 = arith.mulf %3, %26 : vector<8x512xf32>
    %28 = arith.addf %24, %27 : vector<8x512xf32>
    %c2_17 = arith.constant 2 : index
    %c1_18 = arith.constant 1 : index
    %29 = memref.load %arg2[%c2_17, %c1_18] : memref<3x5xf32, #tpu.memory_space<smem>>
    %30 = vector.broadcast %29 : f32 to vector<8x512xf32>
    %31 = arith.mulf %5, %30 : vector<8x512xf32>
    %32 = arith.addf %28, %31 : vector<8x512xf32>
    %c1_19 = arith.constant 1 : index
    %33 = memref.load %arg3[%c1_19] : memref<5xf32, #tpu.memory_space<smem>>
    %34 = vector.broadcast %33 : f32 to vector<8x512xf32>
    %35 = arith.addf %32, %34 : vector<8x512xf32>
    %cst_20 = arith.constant 0.000000e+00 : f32
    %36 = vector.broadcast %cst_20 : f32 to vector<8x512xf32>
    %37 = arith.maximumf %35, %36 : vector<8x512xf32>
    %c0_21 = arith.constant 0 : index
    %c2_22 = arith.constant 2 : index
    %38 = memref.load %arg2[%c0_21, %c2_22] : memref<3x5xf32, #tpu.memory_space<smem>>
    %39 = vector.broadcast %38 : f32 to vector<8x512xf32>
    %40 = arith.mulf %1, %39 : vector<8x512xf32>
    %c1_23 = arith.constant 1 : index
    %c2_24 = arith.constant 2 : index
    %41 = memref.load %arg2[%c1_23, %c2_24] : memref<3x5xf32, #tpu.memory_space<smem>>
    %42 = vector.broadcast %41 : f32 to vector<8x512xf32>
    %43 = arith.mulf %3, %42 : vector<8x512xf32>
    %44 = arith.addf %40, %43 : vector<8x512xf32>
    %c2_25 = arith.constant 2 : index
    %c2_26 = arith.constant 2 : index
    %45 = memref.load %arg2[%c2_25, %c2_26] : memref<3x5xf32, #tpu.memory_space<smem>>
    %46 = vector.broadcast %45 : f32 to vector<8x512xf32>
    %47 = arith.mulf %5, %46 : vector<8x512xf32>
    %48 = arith.addf %44, %47 : vector<8x512xf32>
    %c2_27 = arith.constant 2 : index
    %49 = memref.load %arg3[%c2_27] : memref<5xf32, #tpu.memory_space<smem>>
    %50 = vector.broadcast %49 : f32 to vector<8x512xf32>
    %51 = arith.addf %48, %50 : vector<8x512xf32>
    %cst_28 = arith.constant 0.000000e+00 : f32
    %52 = vector.broadcast %cst_28 : f32 to vector<8x512xf32>
    %53 = arith.maximumf %51, %52 : vector<8x512xf32>
    %c0_29 = arith.constant 0 : index
    %c3 = arith.constant 3 : index
    %54 = memref.load %arg2[%c0_29, %c3] : memref<3x5xf32, #tpu.memory_space<smem>>
    %55 = vector.broadcast %54 : f32 to vector<8x512xf32>
    %56 = arith.mulf %1, %55 : vector<8x512xf32>
    %c1_30 = arith.constant 1 : index
    %c3_31 = arith.constant 3 : index
    %57 = memref.load %arg2[%c1_30, %c3_31] : memref<3x5xf32, #tpu.memory_space<smem>>
    %58 = vector.broadcast %57 : f32 to vector<8x512xf32>
    %59 = arith.mulf %3, %58 : vector<8x512xf32>
    %60 = arith.addf %56, %59 : vector<8x512xf32>
    %c2_32 = arith.constant 2 : index
    %c3_33 = arith.constant 3 : index
    %61 = memref.load %arg2[%c2_32, %c3_33] : memref<3x5xf32, #tpu.memory_space<smem>>
    %62 = vector.broadcast %61 : f32 to vector<8x512xf32>
    %63 = arith.mulf %5, %62 : vector<8x512xf32>
    %64 = arith.addf %60, %63 : vector<8x512xf32>
    %c3_34 = arith.constant 3 : index
    %65 = memref.load %arg3[%c3_34] : memref<5xf32, #tpu.memory_space<smem>>
    %66 = vector.broadcast %65 : f32 to vector<8x512xf32>
    %67 = arith.addf %64, %66 : vector<8x512xf32>
    %cst_35 = arith.constant 0.000000e+00 : f32
    %68 = vector.broadcast %cst_35 : f32 to vector<8x512xf32>
    %69 = arith.maximumf %67, %68 : vector<8x512xf32>
    %c0_36 = arith.constant 0 : index
    %c4 = arith.constant 4 : index
    %70 = memref.load %arg2[%c0_36, %c4] : memref<3x5xf32, #tpu.memory_space<smem>>
    %71 = vector.broadcast %70 : f32 to vector<8x512xf32>
    %72 = arith.mulf %1, %71 : vector<8x512xf32>
    %c1_37 = arith.constant 1 : index
    %c4_38 = arith.constant 4 : index
    %73 = memref.load %arg2[%c1_37, %c4_38] : memref<3x5xf32, #tpu.memory_space<smem>>
    %74 = vector.broadcast %73 : f32 to vector<8x512xf32>
    %75 = arith.mulf %3, %74 : vector<8x512xf32>
    %76 = arith.addf %72, %75 : vector<8x512xf32>
    %c2_39 = arith.constant 2 : index
    %c4_40 = arith.constant 4 : index
    %77 = memref.load %arg2[%c2_39, %c4_40] : memref<3x5xf32, #tpu.memory_space<smem>>
    %78 = vector.broadcast %77 : f32 to vector<8x512xf32>
    %79 = arith.mulf %5, %78 : vector<8x512xf32>
    %80 = arith.addf %76, %79 : vector<8x512xf32>
    %c4_41 = arith.constant 4 : index
    %81 = memref.load %arg3[%c4_41] : memref<5xf32, #tpu.memory_space<smem>>
    %82 = vector.broadcast %81 : f32 to vector<8x512xf32>
    %83 = arith.addf %80, %82 : vector<8x512xf32>
    %cst_42 = arith.constant 0.000000e+00 : f32
    %84 = vector.broadcast %cst_42 : f32 to vector<8x512xf32>
    %85 = arith.maximumf %83, %84 : vector<8x512xf32>
    %c0_43 = arith.constant 0 : index
    %c0_44 = arith.constant 0 : index
    %86 = memref.load %arg4[%c0_43, %c0_44] : memref<5x5xf32, #tpu.memory_space<smem>>
    %87 = vector.broadcast %86 : f32 to vector<8x512xf32>
    %88 = arith.mulf %21, %87 : vector<8x512xf32>
    %c1_45 = arith.constant 1 : index
    %c0_46 = arith.constant 0 : index
    %89 = memref.load %arg4[%c1_45, %c0_46] : memref<5x5xf32, #tpu.memory_space<smem>>
    %90 = vector.broadcast %89 : f32 to vector<8x512xf32>
    %91 = arith.mulf %37, %90 : vector<8x512xf32>
    %92 = arith.addf %88, %91 : vector<8x512xf32>
    %c2_47 = arith.constant 2 : index
    %c0_48 = arith.constant 0 : index
    %93 = memref.load %arg4[%c2_47, %c0_48] : memref<5x5xf32, #tpu.memory_space<smem>>
    %94 = vector.broadcast %93 : f32 to vector<8x512xf32>
    %95 = arith.mulf %53, %94 : vector<8x512xf32>
    %96 = arith.addf %92, %95 : vector<8x512xf32>
    %c3_49 = arith.constant 3 : index
    %c0_50 = arith.constant 0 : index
    %97 = memref.load %arg4[%c3_49, %c0_50] : memref<5x5xf32, #tpu.memory_space<smem>>
    %98 = vector.broadcast %97 : f32 to vector<8x512xf32>
    %99 = arith.mulf %69, %98 : vector<8x512xf32>
    %100 = arith.addf %96, %99 : vector<8x512xf32>
    %c4_51 = arith.constant 4 : index
    %c0_52 = arith.constant 0 : index
    %101 = memref.load %arg4[%c4_51, %c0_52] : memref<5x5xf32, #tpu.memory_space<smem>>
    %102 = vector.broadcast %101 : f32 to vector<8x512xf32>
    %103 = arith.mulf %85, %102 : vector<8x512xf32>
    %104 = arith.addf %100, %103 : vector<8x512xf32>
    %c0_53 = arith.constant 0 : index
    %105 = memref.load %arg5[%c0_53] : memref<5xf32, #tpu.memory_space<smem>>
    %106 = vector.broadcast %105 : f32 to vector<8x512xf32>
    %107 = arith.addf %104, %106 : vector<8x512xf32>
    %c0_54 = arith.constant 0 : index
    %c0_55 = arith.constant 0 : index
    %c0_56 = arith.constant 0 : index
    %108 = vector.load %arg6[%c0_54, %c0_55, %c0_56] : memref<5x8x512xf32, #tpu.memory_space<vmem>>, vector<1x8x512xf32>
    %109 = vector.shape_cast %108 : vector<1x8x512xf32> to vector<8x512xf32>
    %110 = vector.shape_cast %107 : vector<8x512xf32> to vector<1x8x512xf32>
    tpu.vector_store %arg6[%c0_54, %c0_55, %c0_56], %110 {strides = array<i32>} : memref<5x8x512xf32, #tpu.memory_space<vmem>>, vector<1x8x512xf32>,
    %c0_57 = arith.constant 0 : index
    %c1_58 = arith.constant 1 : index
    %111 = memref.load %arg4[%c0_57, %c1_58] : memref<5x5xf32, #tpu.memory_space<smem>>
    %112 = vector.broadcast %111 : f32 to vector<8x512xf32>
    %113 = arith.mulf %21, %112 : vector<8x512xf32>
    %c1_59 = arith.constant 1 : index
    %c1_60 = arith.constant 1 : index
    %114 = memref.load %arg4[%c1_59, %c1_60] : memref<5x5xf32, #tpu.memory_space<smem>>
    %115 = vector.broadcast %114 : f32 to vector<8x512xf32>
    %116 = arith.mulf %37, %115 : vector<8x512xf32>
    %117 = arith.addf %113, %116 : vector<8x512xf32>
    %c2_61 = arith.constant 2 : index
    %c1_62 = arith.constant 1 : index
    %118 = memref.load %arg4[%c2_61, %c1_62] : memref<5x5xf32, #tpu.memory_space<smem>>
    %119 = vector.broadcast %118 : f32 to vector<8x512xf32>
    %120 = arith.mulf %53, %119 : vector<8x512xf32>
    %121 = arith.addf %117, %120 : vector<8x512xf32>
    %c3_63 = arith.constant 3 : index
    %c1_64 = arith.constant 1 : index
    %122 = memref.load %arg4[%c3_63, %c1_64] : memref<5x5xf32, #tpu.memory_space<smem>>
    %123 = vector.broadcast %122 : f32 to vector<8x512xf32>
    %124 = arith.mulf %69, %123 : vector<8x512xf32>
    %125 = arith.addf %121, %124 : vector<8x512xf32>
    %c4_65 = arith.constant 4 : index
    %c1_66 = arith.constant 1 : index
    %126 = memref.load %arg4[%c4_65, %c1_66] : memref<5x5xf32, #tpu.memory_space<smem>>
    %127 = vector.broadcast %126 : f32 to vector<8x512xf32>
    %128 = arith.mulf %85, %127 : vector<8x512xf32>
    %129 = arith.addf %125, %128 : vector<8x512xf32>
    %c1_67 = arith.constant 1 : index
    %130 = memref.load %arg5[%c1_67] : memref<5xf32, #tpu.memory_space<smem>>
    %131 = vector.broadcast %130 : f32 to vector<8x512xf32>
    %132 = arith.addf %129, %131 : vector<8x512xf32>
    %c1_68 = arith.constant 1 : index
    %c0_69 = arith.constant 0 : index
    %c0_70 = arith.constant 0 : index
    %133 = vector.load %arg6[%c1_68, %c0_69, %c0_70] : memref<5x8x512xf32, #tpu.memory_space<vmem>>, vector<1x8x512xf32>
    %134 = vector.shape_cast %133 : vector<1x8x512xf32> to vector<8x512xf32>
    %135 = vector.shape_cast %132 : vector<8x512xf32> to vector<1x8x512xf32>
    tpu.vector_store %arg6[%c1_68, %c0_69, %c0_70], %135 {strides = array<i32>} : memref<5x8x512xf32, #tpu.memory_space<vmem>>, vector<1x8x512xf32>,
    %c0_71 = arith.constant 0 : index
    %c2_72 = arith.constant 2 : index
    %136 = memref.load %arg4[%c0_71, %c2_72] : memref<5x5xf32, #tpu.memory_space<smem>>
    %137 = vector.broadcast %136 : f32 to vector<8x512xf32>
    %138 = arith.mulf %21, %137 : vector<8x512xf32>
    %c1_73 = arith.constant 1 : index
    %c2_74 = arith.constant 2 : index
    %139 = memref.load %arg4[%c1_73, %c2_74] : memref<5x5xf32, #tpu.memory_space<smem>>
    %140 = vector.broadcast %139 : f32 to vector<8x512xf32>
    %141 = arith.mulf %37, %140 : vector<8x512xf32>
    %142 = arith.addf %138, %141 : vector<8x512xf32>
    %c2_75 = arith.constant 2 : index
    %c2_76 = arith.constant 2 : index
    %143 = memref.load %arg4[%c2_75, %c2_76] : memref<5x5xf32, #tpu.memory_space<smem>>
    %144 = vector.broadcast %143 : f32 to vector<8x512xf32>
    %145 = arith.mulf %53, %144 : vector<8x512xf32>
    %146 = arith.addf %142, %145 : vector<8x512xf32>
    %c3_77 = arith.constant 3 : index
    %c2_78 = arith.constant 2 : index
    %147 = memref.load %arg4[%c3_77, %c2_78] : memref<5x5xf32, #tpu.memory_space<smem>>
    %148 = vector.broadcast %147 : f32 to vector<8x512xf32>
    %149 = arith.mulf %69, %148 : vector<8x512xf32>
    %150 = arith.addf %146, %149 : vector<8x512xf32>
    %c4_79 = arith.constant 4 : index
    %c2_80 = arith.constant 2 : index
    %151 = memref.load %arg4[%c4_79, %c2_80] : memref<5x5xf32, #tpu.memory_space<smem>>
    %152 = vector.broadcast %151 : f32 to vector<8x512xf32>
    %153 = arith.mulf %85, %152 : vector<8x512xf32>
    %154 = arith.addf %150, %153 : vector<8x512xf32>
    %c2_81 = arith.constant 2 : index
    %155 = memref.load %arg5[%c2_81] : memref<5xf32, #tpu.memory_space<smem>>
    %156 = vector.broadcast %155 : f32 to vector<8x512xf32>
    %157 = arith.addf %154, %156 : vector<8x512xf32>
    %c2_82 = arith.constant 2 : index
    %c0_83 = arith.constant 0 : index
    %c0_84 = arith.constant 0 : index
    %158 = vector.load %arg6[%c2_82, %c0_83, %c0_84] : memref<5x8x512xf32, #tpu.memory_space<vmem>>, vector<1x8x512xf32>
    %159 = vector.shape_cast %158 : vector<1x8x512xf32> to vector<8x512xf32>
    %160 = vector.shape_cast %157 : vector<8x512xf32> to vector<1x8x512xf32>
    tpu.vector_store %arg6[%c2_82, %c0_83, %c0_84], %160 {strides = array<i32>} : memref<5x8x512xf32, #tpu.memory_space<vmem>>, vector<1x8x512xf32>,
    %c0_85 = arith.constant 0 : index
    %c3_86 = arith.constant 3 : index
    %161 = memref.load %arg4[%c0_85, %c3_86] : memref<5x5xf32, #tpu.memory_space<smem>>
    %162 = vector.broadcast %161 : f32 to vector<8x512xf32>
    %163 = arith.mulf %21, %162 : vector<8x512xf32>
    %c1_87 = arith.constant 1 : index
    %c3_88 = arith.constant 3 : index
    %164 = memref.load %arg4[%c1_87, %c3_88] : memref<5x5xf32, #tpu.memory_space<smem>>
    %165 = vector.broadcast %164 : f32 to vector<8x512xf32>
    %166 = arith.mulf %37, %165 : vector<8x512xf32>
    %167 = arith.addf %163, %166 : vector<8x512xf32>
    %c2_89 = arith.constant 2 : index
    %c3_90 = arith.constant 3 : index
    %168 = memref.load %arg4[%c2_89, %c3_90] : memref<5x5xf32, #tpu.memory_space<smem>>
    %169 = vector.broadcast %168 : f32 to vector<8x512xf32>
    %170 = arith.mulf %53, %169 : vector<8x512xf32>
    %171 = arith.addf %167, %170 : vector<8x512xf32>
    %c3_91 = arith.constant 3 : index
    %c3_92 = arith.constant 3 : index
    %172 = memref.load %arg4[%c3_91, %c3_92] : memref<5x5xf32, #tpu.memory_space<smem>>
    %173 = vector.broadcast %172 : f32 to vector<8x512xf32>
    %174 = arith.mulf %69, %173 : vector<8x512xf32>
    %175 = arith.addf %171, %174 : vector<8x512xf32>
    %c4_93 = arith.constant 4 : index
    %c3_94 = arith.constant 3 : index
    %176 = memref.load %arg4[%c4_93, %c3_94] : memref<5x5xf32, #tpu.memory_space<smem>>
    %177 = vector.broadcast %176 : f32 to vector<8x512xf32>
    %178 = arith.mulf %85, %177 : vector<8x512xf32>
    %179 = arith.addf %175, %178 : vector<8x512xf32>
    %c3_95 = arith.constant 3 : index
    %180 = memref.load %arg5[%c3_95] : memref<5xf32, #tpu.memory_space<smem>>
    %181 = vector.broadcast %180 : f32 to vector<8x512xf32>
    %182 = arith.addf %179, %181 : vector<8x512xf32>
    %c3_96 = arith.constant 3 : index
    %c0_97 = arith.constant 0 : index
    %c0_98 = arith.constant 0 : index
    %183 = vector.load %arg6[%c3_96, %c0_97, %c0_98] : memref<5x8x512xf32, #tpu.memory_space<vmem>>, vector<1x8x512xf32>
    %184 = vector.shape_cast %183 : vector<1x8x512xf32> to vector<8x512xf32>
    %185 = vector.shape_cast %182 : vector<8x512xf32> to vector<1x8x512xf32>
    tpu.vector_store %arg6[%c3_96, %c0_97, %c0_98], %185 {strides = array<i32>} : memref<5x8x512xf32, #tpu.memory_space<vmem>>, vector<1x8x512xf32>,
    %c0_99 = arith.constant 0 : index
    %c4_100 = arith.constant 4 : index
    %186 = memref.load %arg4[%c0_99, %c4_100] : memref<5x5xf32, #tpu.memory_space<smem>>
    %187 = vector.broadcast %186 : f32 to vector<8x512xf32>
    %188 = arith.mulf %21, %187 : vector<8x512xf32>
    %c1_101 = arith.constant 1 : index
    %c4_102 = arith.constant 4 : index
    %189 = memref.load %arg4[%c1_101, %c4_102] : memref<5x5xf32, #tpu.memory_space<smem>>
    %190 = vector.broadcast %189 : f32 to vector<8x512xf32>
    %191 = arith.mulf %37, %190 : vector<8x512xf32>
    %192 = arith.addf %188, %191 : vector<8x512xf32>
    %c2_103 = arith.constant 2 : index
    %c4_104 = arith.constant 4 : index
    %193 = memref.load %arg4[%c2_103, %c4_104] : memref<5x5xf32, #tpu.memory_space<smem>>
    %194 = vector.broadcast %193 : f32 to vector<8x512xf32>
    %195 = arith.mulf %53, %194 : vector<8x512xf32>
    %196 = arith.addf %192, %195 : vector<8x512xf32>
    %c3_105 = arith.constant 3 : index
    %c4_106 = arith.constant 4 : index
    %197 = memref.load %arg4[%c3_105, %c4_106] : memref<5x5xf32, #tpu.memory_space<smem>>
    %198 = vector.broadcast %197 : f32 to vector<8x512xf32>
    %199 = arith.mulf %69, %198 : vector<8x512xf32>
    %200 = arith.addf %196, %199 : vector<8x512xf32>
    %c4_107 = arith.constant 4 : index
    %c4_108 = arith.constant 4 : index
    %201 = memref.load %arg4[%c4_107, %c4_108] : memref<5x5xf32, #tpu.memory_space<smem>>
    %202 = vector.broadcast %201 : f32 to vector<8x512xf32>
    %203 = arith.mulf %85, %202 : vector<8x512xf32>
    %204 = arith.addf %200, %203 : vector<8x512xf32>
    %c4_109 = arith.constant 4 : index
    %205 = memref.load %arg5[%c4_109] : memref<5xf32, #tpu.memory_space<smem>>
    %206 = vector.broadcast %205 : f32 to vector<8x512xf32>
    %207 = arith.addf %204, %206 : vector<8x512xf32>
    %c4_110 = arith.constant 4 : index
    %c0_111 = arith.constant 0 : index
    %c0_112 = arith.constant 0 : index
    %208 = vector.load %arg6[%c4_110, %c0_111, %c0_112] : memref<5x8x512xf32, #tpu.memory_space<vmem>>, vector<1x8x512xf32>
    %209 = vector.shape_cast %208 : vector<1x8x512xf32> to vector<8x512xf32>
    %210 = vector.shape_cast %207 : vector<8x512xf32> to vector<1x8x512xf32>
    tpu.vector_store %arg6[%c4_110, %c0_111, %c0_112], %210 {strides = array<i32>} : memref<5x8x512xf32, #tpu.memory_space<vmem>>, vector<1x8x512xf32>,
    return
  }
  func.func @transform_0(%arg0: i32) -> (i32, i32, i32) {
    %c0_i32 = arith.constant 0 : i32
    %c0_i32_0 = arith.constant 0 : i32
    %c0_i32_1 = arith.constant 0 : i32
    return %c0_i32, %arg0, %c0_i32_0 : i32, i32, i32
  }
  func.func @transform_1(%arg0: i32) -> (i32, i32) {
    %c0_i32 = arith.constant 0 : i32
    %c0_i32_0 = arith.constant 0 : i32
    %c0_i32_1 = arith.constant 0 : i32
    return %c0_i32, %c0_i32_0 : i32, i32
  }
  func.func @transform_2(%arg0: i32) -> i32 {
    %c0_i32 = arith.constant 0 : i32
    %c0_i32_0 = arith.constant 0 : i32
    return %c0_i32 : i32
  }
  func.func @transform_3(%arg0: i32) -> (i32, i32) {
    %c0_i32 = arith.constant 0 : i32
    %c0_i32_0 = arith.constant 0 : i32
    %c0_i32_1 = arith.constant 0 : i32
    return %c0_i32, %c0_i32_0 : i32, i32
  }
  func.func @transform_4(%arg0: i32) -> i32 {
    %c0_i32 = arith.constant 0 : i32
    %c0_i32_0 = arith.constant 0 : i32
    return %c0_i32 : i32
  }
  func.func @transform_5(%arg0: i32) -> (i32, i32, i32) {
    %c0_i32 = arith.constant 0 : i32
    %c0_i32_0 = arith.constant 0 : i32
    %c0_i32_1 = arith.constant 0 : i32
    return %c0_i32, %arg0, %c0_i32_0 : i32, i32, i32
  }
}

</mosaic_0001>

<llo_original>
// kernel: tpu_custom_call.1
$region0: #{tpu_custom_call.1}
  #allocation0 [shape = 'u32[]', space=smem, size = 0x4, offset = 0x4, fixed_abs, tag = 'smem constant byte address 0x4 - core index']
  #allocation1 [shape = 'u32[144,128]{1,0:T(1,128)}', space=vmem, size = 0x12000, scoped, tag = 'internal scratch']
  %s0 = inlined_call_operand.hbm [shape: f32[3,8,512], index: 0, kind: input, shape index: {}]
  %s1 = inlined_call_operand.hbm [shape: f32[3,5], index: 1, kind: input, shape index: {}]
  %s2 = inlined_call_operand.vmem [shape: f32[5], index: 2, kind: input, shape index: {}]
  %s3 = inlined_call_operand.hbm [shape: f32[5,5], index: 3, kind: input, shape index: {}]
  %s4 = inlined_call_operand.vmem [shape: f32[5], index: 4, kind: input, shape index: {}]
  %s5 = inlined_call_operand.hbm [shape: f32[5,8,512], index: 5, kind: output, shape index: {}]
  %s6 = sld [smem:[#allocation0]]
  $region50: #{tpu_custom_call.1} parent=0
    _
  %s8 = ssub.s32 1, %s6
  %s9 = scalar_select 0, %s8, %s6
  $region1: #{tpu_custom_call.1} parent=0
    #allocation2 [shape = 'u8[49152]{0}', space=vmem, size = 0xc000, scoped, tag = 'input window, operand 0, single buffered']
    #allocation3 [shape = 's32[1]{0}', space=sflag, size = 0x4, scoped, tag = 'scoped memory for tpu_custom_call.1']
    #allocation4 [shape = 's32[1]{0}', space=sflag, size = 0x4, scoped, tag = 'scoped memory for tpu_custom_call.1']
    #allocation5 [shape = 's32[1]{0}', space=sflag, size = 0x4, scoped, tag = 'scoped memory for tpu_custom_call.1']
    #allocation6 [shape = 's32[1]{0}', space=sflag, size = 0x4, scoped, tag = 'scoped memory for tpu_custom_call.1']
    #allocation7 [shape = 'u8[2048]{0}', space=smem, size = 0x800, scoped, tag = 'input window, operand 1, single buffered']
    #allocation8 [shape = 'u8[512]{0}', space=smem, size = 0x200, scoped, tag = 'input window, operand 2, single buffered']
    #allocation9 [shape = 'u8[4096]{0}', space=smem, size = 0x1000, scoped, tag = 'input window, operand 3, single buffered']
    #allocation10 [shape = 's32[1]{0}', space=sflag, size = 0x4, scoped, tag = 'scoped memory for tpu_custom_call.1']
    #allocation11 [shape = 'u8[512]{0}', space=smem, size = 0x200, scoped, tag = 'input window, operand 4, single buffered']
    #allocation12 [shape = 's32[1]{0}', space=sflag, size = 0x4, scoped, tag = 'scoped memory for tpu_custom_call.1']
    #allocation13 [shape = 'u8[81920]{0}', space=vmem, size = 0x14000, scoped, tag = 'output window, operand 0, single buffered']
    %10 = vsyncpa [#allocation3], 0
    %11 = vsyncpa [#allocation5], 0
    %12 = vsyncpa [#allocation6], 0
    %13 = vsyncpa [#allocation10], 0
    %14 = vsyncpa [#allocation12], 0
    %15 = vsyncpa [#allocation4], 0
    // Predicated region
    $region2: #{tpu_custom_call.1} parent=1 // pred_check
      _
    $region3: #{tpu_custom_call.1} parent=1 // pred_check_branch
      %17 = sbr.rel (0) target = $region5
    $region4: #{tpu_custom_call.1} parent=1 // pred_region
      %s19 = ssub.s32 1536, 1536
      %20 = vsyncadd [#allocation3], %s19
      %s21 = sshll.u32 [#allocation2], 4
      %s22 = int_to_ptr.vmem [resolvable:$true] %s21
      %27 = dma.hbm_to_vmem [thread:$0]  %s0, 1536, %s22, [#allocation3], 512, 512, 32
    $region5: #{tpu_custom_call.1} parent=1 // pred_fallthru
      _
    // Predicated region
    $region6: #{tpu_custom_call.1} parent=1 // pred_check
      _
    $region7: #{tpu_custom_call.1} parent=1 // pred_check_branch
      %29 = sbr.rel (0) target = $region9
    $region8: #{tpu_custom_call.1} parent=1 // pred_region
      %s31 = ssub.s32 64, 64
      %32 = vsyncadd [#allocation5], %s31
      %35 = dma.hbm_to_smem %s1, 64, [#allocation7], [#allocation5]
    $region9: #{tpu_custom_call.1} parent=1 // pred_fallthru
      _
    // Predicated region
    $region10: #{tpu_custom_call.1} parent=1 // pred_check
      _
    $region11: #{tpu_custom_call.1} parent=1 // pred_check_branch
      %37 = sbr.rel (0) target = $region13
    $region12: #{tpu_custom_call.1} parent=1 // pred_region
      %s39 = ssub.s32 16, 16
      %40 = vsyncadd [#allocation6], %s39
      %s42 = sshll.u32 %s2, 4
      %s43 = int_to_ptr.vmem [resolvable:$true] %s42
      %45 = dma.vmem_to_smem %s43, 16, [#allocation8], [#allocation6]
    $region13: #{tpu_custom_call.1} parent=1 // pred_fallthru
      _
    // Predicated region
    $region14: #{tpu_custom_call.1} parent=1 // pred_check
      _
    $region15: #{tpu_custom_call.1} parent=1 // pred_check_branch
      %47 = sbr.rel (0) target = $region17
    $region16: #{tpu_custom_call.1} parent=1 // pred_region
      %s49 = ssub.s32 128, 128
      %50 = vsyncadd [#allocation10], %s49
      %53 = dma.hbm_to_smem %s3, 128, [#allocation9], [#allocation10]
    $region17: #{tpu_custom_call.1} parent=1 // pred_fallthru
      _
    // Predicated region
    $region18: #{tpu_custom_call.1} parent=1 // pred_check
      _
    $region19: #{tpu_custom_call.1} parent=1 // pred_check_branch
      %55 = sbr.rel (0) target = $region21
    $region20: #{tpu_custom_call.1} parent=1 // pred_region
      %s57 = ssub.s32 16, 16
      %58 = vsyncadd [#allocation12], %s57
      %s60 = sshll.u32 %s4, 4
      %s61 = int_to_ptr.vmem [resolvable:$true] %s60
      %63 = dma.vmem_to_smem %s61, 16, [#allocation11], [#allocation12]
    $region21: #{tpu_custom_call.1} parent=1 // pred_fallthru
      _
    // Predicated region
    $region22: #{tpu_custom_call.1} parent=1 // pred_check
      _
    $region23: #{tpu_custom_call.1} parent=1 // pred_check_branch
      %65 = sbr.rel (0) target = $region25
    $region24: #{tpu_custom_call.1} parent=1 // pred_region
      %66 = dma.done [#allocation3], 1536
    $region25: #{tpu_custom_call.1} parent=1 // pred_fallthru
      _
    // Predicated region
    $region26: #{tpu_custom_call.1} parent=1 // pred_check
      _
    $region27: #{tpu_custom_call.1} parent=1 // pred_check_branch
      %68 = sbr.rel (0) target = $region29
    $region28: #{tpu_custom_call.1} parent=1 // pred_region
      %69 = dma.done [#allocation5], 64
    $region29: #{tpu_custom_call.1} parent=1 // pred_fallthru
      _
    // Predicated region
    $region30: #{tpu_custom_call.1} parent=1 // pred_check
      _
    $region31: #{tpu_custom_call.1} parent=1 // pred_check_branch
      %71 = sbr.rel (0) target = $region33
    $region32: #{tpu_custom_call.1} parent=1 // pred_region
      %72 = dma.done [#allocation6], 16
    $region33: #{tpu_custom_call.1} parent=1 // pred_fallthru
      _
    // Predicated region
    $region34: #{tpu_custom_call.1} parent=1 // pred_check
      _
    $region35: #{tpu_custom_call.1} parent=1 // pred_check_branch
      %74 = sbr.rel (0) target = $region37
    $region36: #{tpu_custom_call.1} parent=1 // pred_region
      %75 = dma.done [#allocation10], 128
    $region37: #{tpu_custom_call.1} parent=1 // pred_fallthru
      _
    // Predicated region
    $region38: #{tpu_custom_call.1} parent=1 // pred_check
      _
    $region39: #{tpu_custom_call.1} parent=1 // pred_check_branch
      %77 = sbr.rel (0) target = $region41
    $region40: #{tpu_custom_call.1} parent=1 // pred_region
      %78 = dma.done [#allocation12], 16
    $region41: #{tpu_custom_call.1} parent=1 // pred_fallthru
      _
    %79 = sfence
    %v80 = vld [vmem:[#allocation2] sm:$0xff]
    %v81 = vld [vmem:[#allocation2 + $0x8] sm:$0xff]
    %v82 = vld [vmem:[#allocation2 + $0x10] sm:$0xff]
    %v83 = vld [vmem:[#allocation2 + $0x18] sm:$0xff]
    %s84 = scalar_lea.vmem [#allocation2], 32
    %v85 = vld [vmem:[%s84] sm:$0xff]
    %v86 = vld [vmem:[%s84 + $0x8] sm:$0xff]
    %v87 = vld [vmem:[%s84 + $0x10] sm:$0xff]
    %v88 = vld [vmem:[%s84 + $0x18] sm:$0xff]
    %s89 = scalar_lea.vmem [#allocation2], 64
    %v90 = vld [vmem:[%s89] sm:$0xff]
    %v91 = vld [vmem:[%s89 + $0x8] sm:$0xff]
    %v92 = vld [vmem:[%s89 + $0x10] sm:$0xff]
    %v93 = vld [vmem:[%s89 + $0x18] sm:$0xff]
    %s94 = sld [smem:[#allocation7]]
    %v95 = vstv %s94
    %v96 = vmul.f32 %v80, %v95
    %v97 = vmul.f32 %v81, %v95
    %v98 = vmul.f32 %v82, %v95
    %v99 = vmul.f32 %v83, %v95
    %s100 = sld [smem:[#allocation7 + $0x80]]
    %v101 = vstv %s100
    %v102 = vmul.f32 %v85, %v101
    %v103 = vmul.f32 %v86, %v101
    %v104 = vmul.f32 %v87, %v101
    %v105 = vmul.f32 %v88, %v101
    %v106 = vadd.f32 %v96, %v102
    %v107 = vadd.f32 %v97, %v103
    %v108 = vadd.f32 %v98, %v104
    %v109 = vadd.f32 %v99, %v105
    %s110 = sld [smem:[#allocation7 + $0x100]]
    %v111 = vstv %s110
    %v112 = vmul.f32 %v90, %v111
    %v113 = vmul.f32 %v91, %v111
    %v114 = vmul.f32 %v92, %v111
    %v115 = vmul.f32 %v93, %v111
    %v116 = vadd.f32 %v106, %v112
    %v117 = vadd.f32 %v107, %v113
    %v118 = vadd.f32 %v108, %v114
    %v119 = vadd.f32 %v109, %v115
    %s120 = sld [smem:[#allocation8]]
    %v121 = vstv %s120
    %v122 = vadd.f32 %v116, %v121
    %v123 = vadd.f32 %v117, %v121
    %v124 = vadd.f32 %v118, %v121
    %v125 = vadd.f32 %v119, %v121
    %v126 = vmax.f32 %v122, 0.0
    %v127 = vmax.f32 %v123, 0.0
    %v128 = vmax.f32 %v124, 0.0
    %v129 = vmax.f32 %v125, 0.0
    %s130 = sld [smem:[#allocation7 + $0x1]]
    %v131 = vstv %s130
    %v132 = vmul.f32 %v80, %v131
    %v133 = vmul.f32 %v81, %v131
    %v134 = vmul.f32 %v82, %v131
    %v135 = vmul.f32 %v83, %v131
    %s136 = sld [smem:[#allocation7 + $0x81]]
    %v137 = vstv %s136
    %v138 = vmul.f32 %v85, %v137
    %v139 = vmul.f32 %v86, %v137
    %v140 = vmul.f32 %v87, %v137
    %v141 = vmul.f32 %v88, %v137
    %v142 = vadd.f32 %v132, %v138
    %v143 = vadd.f32 %v133, %v139
    %v144 = vadd.f32 %v134, %v140
    %v145 = vadd.f32 %v135, %v141
    %s146 = sld [smem:[#allocation7 + $0x101]]
    %v147 = vstv %s146
    %v148 = vmul.f32 %v90, %v147
    %v149 = vmul.f32 %v91, %v147
    %v150 = vmul.f32 %v92, %v147
    %v151 = vmul.f32 %v93, %v147
    %v152 = vadd.f32 %v142, %v148
    %v153 = vadd.f32 %v143, %v149
    %v154 = vadd.f32 %v144, %v150
    %v155 = vadd.f32 %v145, %v151
    %s156 = sld [smem:[#allocation8 + $0x1]]
    %v157 = vstv %s156
    %v158 = vadd.f32 %v152, %v157
    %v159 = vadd.f32 %v153, %v157
    %v160 = vadd.f32 %v154, %v157
    %v161 = vadd.f32 %v155, %v157
    %v162 = vmax.f32 %v158, 0.0
    %v163 = vmax.f32 %v159, 0.0
    %v164 = vmax.f32 %v160, 0.0
    %v165 = vmax.f32 %v161, 0.0
    %s166 = sld [smem:[#allocation7 + $0x2]]
    %v167 = vstv %s166
    %v168 = vmul.f32 %v80, %v167
    %v169 = vmul.f32 %v81, %v167
    %v170 = vmul.f32 %v82, %v167
    %v171 = vmul.f32 %v83, %v167
    %s172 = sld [smem:[#allocation7 + $0x82]]
    %v173 = vstv %s172
    %v174 = vmul.f32 %v85, %v173
    %v175 = vmul.f32 %v86, %v173
    %v176 = vmul.f32 %v87, %v173
    %v177 = vmul.f32 %v88, %v173
    %v178 = vadd.f32 %v168, %v174
    %v179 = vadd.f32 %v169, %v175
    %v180 = vadd.f32 %v170, %v176
    %v181 = vadd.f32 %v171, %v177
    %s182 = sld [smem:[#allocation7 + $0x102]]
    %v183 = vstv %s182
    %v184 = vmul.f32 %v90, %v183
    %v185 = vmul.f32 %v91, %v183
    %v186 = vmul.f32 %v92, %v183
    %v187 = vmul.f32 %v93, %v183
    %v188 = vadd.f32 %v178, %v184
    %v189 = vadd.f32 %v179, %v185
    %v190 = vadd.f32 %v180, %v186
    %v191 = vadd.f32 %v181, %v187
    %s192 = sld [smem:[#allocation8 + $0x2]]
    %v193 = vstv %s192
    %v194 = vadd.f32 %v188, %v193
    %v195 = vadd.f32 %v189, %v193
    %v196 = vadd.f32 %v190, %v193
    %v197 = vadd.f32 %v191, %v193
    %v198 = vmax.f32 %v194, 0.0
    %v199 = vmax.f32 %v195, 0.0
    %v200 = vmax.f32 %v196, 0.0
    %v201 = vmax.f32 %v197, 0.0
    %s202 = sld [smem:[#allocation7 + $0x3]]
    %v203 = vstv %s202
    %v204 = vmul.f32 %v80, %v203
    %v205 = vmul.f32 %v81, %v203
    %v206 = vmul.f32 %v82, %v203
    %v207 = vmul.f32 %v83, %v203
    %s208 = sld [smem:[#allocation7 + $0x83]]
    %v209 = vstv %s208
    %v210 = vmul.f32 %v85, %v209
    %v211 = vmul.f32 %v86, %v209
    %v212 = vmul.f32 %v87, %v209
    %v213 = vmul.f32 %v88, %v209
    %v214 = vadd.f32 %v204, %v210
    %v215 = vadd.f32 %v205, %v211
    %v216 = vadd.f32 %v206, %v212
    %v217 = vadd.f32 %v207, %v213
    %s218 = sld [smem:[#allocation7 + $0x103]]
    %v219 = vstv %s218
    %v220 = vmul.f32 %v90, %v219
    %v221 = vmul.f32 %v91, %v219
    %v222 = vmul.f32 %v92, %v219
    %v223 = vmul.f32 %v93, %v219
    %v224 = vadd.f32 %v214, %v220
    %v225 = vadd.f32 %v215, %v221
    %v226 = vadd.f32 %v216, %v222
    %v227 = vadd.f32 %v217, %v223
    %s228 = sld [smem:[#allocation8 + $0x3]]
    %v229 = vstv %s228
    %v230 = vadd.f32 %v224, %v229
    %v231 = vadd.f32 %v225, %v229
    %v232 = vadd.f32 %v226, %v229
    %v233 = vadd.f32 %v227, %v229
    %v234 = vmax.f32 %v230, 0.0
    %v235 = vmax.f32 %v231, 0.0
    %v236 = vmax.f32 %v232, 0.0
    %v237 = vmax.f32 %v233, 0.0
    %s238 = sld [smem:[#allocation7 + $0x4]]
    %v239 = vstv %s238
    %v240 = vmul.f32 %v80, %v239
    %v241 = vmul.f32 %v81, %v239
    %v242 = vmul.f32 %v82, %v239
    %v243 = vmul.f32 %v83, %v239
    %s244 = sld [smem:[#allocation7 + $0x84]]
    %v245 = vstv %s244
    %v246 = vmul.f32 %v85, %v245
    %v247 = vmul.f32 %v86, %v245
    %v248 = vmul.f32 %v87, %v245
    %v249 = vmul.f32 %v88, %v245
    %v250 = vadd.f32 %v240, %v246
    %v251 = vadd.f32 %v241, %v247
    %v252 = vadd.f32 %v242, %v248
    %v253 = vadd.f32 %v243, %v249
    %s254 = sld [smem:[#allocation7 + $0x104]]
    %v255 = vstv %s254
    %v256 = vmul.f32 %v90, %v255
    %v257 = vmul.f32 %v91, %v255
    %v258 = vmul.f32 %v92, %v255
    %v259 = vmul.f32 %v93, %v255
    %v260 = vadd.f32 %v250, %v256
    %v261 = vadd.f32 %v251, %v257
    %v262 = vadd.f32 %v252, %v258
    %v263 = vadd.f32 %v253, %v259
    %s264 = sld [smem:[#allocation8 + $0x4]]
    %v265 = vstv %s264
    %v266 = vadd.f32 %v260, %v265
    %v267 = vadd.f32 %v261, %v265
    %v268 = vadd.f32 %v262, %v265
    %v269 = vadd.f32 %v263, %v265
    %v270 = vmax.f32 %v266, 0.0
    %v271 = vmax.f32 %v267, 0.0
    %v272 = vmax.f32 %v268, 0.0
    %v273 = vmax.f32 %v269, 0.0
    %s274 = sld [smem:[#allocation9]]
    %v275 = vstv %s274
    %v276 = vmul.f32 %v126, %v275
    %v277 = vmul.f32 %v127, %v275
    %v278 = vmul.f32 %v128, %v275
    %v279 = vmul.f32 %v129, %v275
    %s280 = sld [smem:[#allocation9 + $0x80]]
    %v281 = vstv %s280
    %v282 = vmul.f32 %v162, %v281
    %v283 = vmul.f32 %v163, %v281
    %v284 = vmul.f32 %v164, %v281
    %v285 = vmul.f32 %v165, %v281
    %v286 = vadd.f32 %v276, %v282
    %v287 = vadd.f32 %v277, %v283
    %v288 = vadd.f32 %v278, %v284
    %v289 = vadd.f32 %v279, %v285
    %s290 = sld [smem:[#allocation9 + $0x100]]
    %v291 = vstv %s290
    %v292 = vmul.f32 %v198, %v291
    %v293 = vmul.f32 %v199, %v291
    %v294 = vmul.f32 %v200, %v291
    %v295 = vmul.f32 %v201, %v291
    %v296 = vadd.f32 %v286, %v292
    %v297 = vadd.f32 %v287, %v293
    %v298 = vadd.f32 %v288, %v294
    %v299 = vadd.f32 %v289, %v295
    %s300 = sld [smem:[#allocation9 + $0x180]]
    %v301 = vstv %s300
    %v302 = vmul.f32 %v234, %v301
    %v303 = vmul.f32 %v235, %v301
    %v304 = vmul.f32 %v236, %v301
    %v305 = vmul.f32 %v237, %v301
    %v306 = vadd.f32 %v296, %v302
    %v307 = vadd.f32 %v297, %v303
    %v308 = vadd.f32 %v298, %v304
    %v309 = vadd.f32 %v299, %v305
    %s310 = sld [smem:[#allocation9 + $0x200]]
    %v311 = vstv %s310
    %v312 = vmul.f32 %v270, %v311
    %v313 = vmul.f32 %v271, %v311
    %v314 = vmul.f32 %v272, %v311
    %v315 = vmul.f32 %v273, %v311
    %v316 = vadd.f32 %v306, %v312
    %v317 = vadd.f32 %v307, %v313
    %v318 = vadd.f32 %v308, %v314
    %v319 = vadd.f32 %v309, %v315
    %s320 = sld [smem:[#allocation11]]
    %v321 = vstv %s320
    %v322 = vadd.f32 %v316, %v321
    %v323 = vadd.f32 %v317, %v321
    %v324 = vadd.f32 %v318, %v321
    %v325 = vadd.f32 %v319, %v321
    %326 = vst [vmem:[#allocation13] sm:$0xff] %v322
    %327 = vst [vmem:[#allocation13 + $0x8] sm:$0xff] %v323
    %328 = vst [vmem:[#allocation13 + $0x10] sm:$0xff] %v324
    %329 = vst [vmem:[#allocation13 + $0x18] sm:$0xff] %v325
    %s330 = sld [smem:[#allocation9 + $0x1]]
    %v331 = vstv %s330
    %v332 = vmul.f32 %v126, %v331
    %v333 = vmul.f32 %v127, %v331
    %v334 = vmul.f32 %v128, %v331
    %v335 = vmul.f32 %v129, %v331
    %s336 = sld [smem:[#allocation9 + $0x81]]
    %v337 = vstv %s336
    %v338 = vmul.f32 %v162, %v337
    %v339 = vmul.f32 %v163, %v337
    %v340 = vmul.f32 %v164, %v337
    %v341 = vmul.f32 %v165, %v337
    %v342 = vadd.f32 %v332, %v338
    %v343 = vadd.f32 %v333, %v339
    %v344 = vadd.f32 %v334, %v340
    %v345 = vadd.f32 %v335, %v341
    %s346 = sld [smem:[#allocation9 + $0x101]]
    %v347 = vstv %s346
    %v348 = vmul.f32 %v198, %v347
    %v349 = vmul.f32 %v199, %v347
    %v350 = vmul.f32 %v200, %v347
    %v351 = vmul.f32 %v201, %v347
    %v352 = vadd.f32 %v342, %v348
    %v353 = vadd.f32 %v343, %v349
    %v354 = vadd.f32 %v344, %v350
    %v355 = vadd.f32 %v345, %v351
    %s356 = sld [smem:[#allocation9 + $0x181]]
    %v357 = vstv %s356
    %v358 = vmul.f32 %v234, %v357
    %v359 = vmul.f32 %v235, %v357
    %v360 = vmul.f32 %v236, %v357
    %v361 = vmul.f32 %v237, %v357
    %v362 = vadd.f32 %v352, %v358
    %v363 = vadd.f32 %v353, %v359
    %v364 = vadd.f32 %v354, %v360
    %v365 = vadd.f32 %v355, %v361
    %s366 = sld [smem:[#allocation9 + $0x201]]
    %v367 = vstv %s366
    %v368 = vmul.f32 %v270, %v367
    %v369 = vmul.f32 %v271, %v367
    %v370 = vmul.f32 %v272, %v367
    %v371 = vmul.f32 %v273, %v367
    %v372 = vadd.f32 %v362, %v368
    %v373 = vadd.f32 %v363, %v369
    %v374 = vadd.f32 %v364, %v370
    %v375 = vadd.f32 %v365, %v371
    %s376 = sld [smem:[#allocation11 + $0x1]]
    %v377 = vstv %s376
    %v378 = vadd.f32 %v372, %v377
    %v379 = vadd.f32 %v373, %v377
    %v380 = vadd.f32 %v374, %v377
    %v381 = vadd.f32 %v375, %v377
    %s382 = scalar_lea.vmem [#allocation13], 32
    %383 = vst [vmem:[%s382] sm:$0xff] %v378
    %384 = vst [vmem:[%s382 + $0x8] sm:$0xff] %v379
    %385 = vst [vmem:[%s382 + $0x10] sm:$0xff] %v380
    %386 = vst [vmem:[%s382 + $0x18] sm:$0xff] %v381
    %s387 = sld [smem:[#allocation9 + $0x2]]
    %v388 = vstv %s387
    %v389 = vmul.f32 %v126, %v388
    %v390 = vmul.f32 %v127, %v388
    %v391 = vmul.f32 %v128, %v388
    %v392 = vmul.f32 %v129, %v388
    %s393 = sld [smem:[#allocation9 + $0x82]]
    %v394 = vstv %s393
    %v395 = vmul.f32 %v162, %v394
    %v396 = vmul.f32 %v163, %v394
    %v397 = vmul.f32 %v164, %v394
    %v398 = vmul.f32 %v165, %v394
    %v399 = vadd.f32 %v389, %v395
    %v400 = vadd.f32 %v390, %v396
    %v401 = vadd.f32 %v391, %v397
    %v402 = vadd.f32 %v392, %v398
    %s403 = sld [smem:[#allocation9 + $0x102]]
    %v404 = vstv %s403
    %v405 = vmul.f32 %v198, %v404
    %v406 = vmul.f32 %v199, %v404
    %v407 = vmul.f32 %v200, %v404
    %v408 = vmul.f32 %v201, %v404
    %v409 = vadd.f32 %v399, %v405
    %v410 = vadd.f32 %v400, %v406
    %v411 = vadd.f32 %v401, %v407
    %v412 = vadd.f32 %v402, %v408
    %s413 = sld [smem:[#allocation9 + $0x182]]
    %v414 = vstv %s413
    %v415 = vmul.f32 %v234, %v414
    %v416 = vmul.f32 %v235, %v414
    %v417 = vmul.f32 %v236, %v414
    %v418 = vmul.f32 %v237, %v414
    %v419 = vadd.f32 %v409, %v415
    %v420 = vadd.f32 %v410, %v416
    %v421 = vadd.f32 %v411, %v417
    %v422 = vadd.f32 %v412, %v418
    %s423 = sld [smem:[#allocation9 + $0x202]]
    %v424 = vstv %s423
    %v425 = vmul.f32 %v270, %v424
    %v426 = vmul.f32 %v271, %v424
    %v427 = vmul.f32 %v272, %v424
    %v428 = vmul.f32 %v273, %v424
    %v429 = vadd.f32 %v419, %v425
    %v430 = vadd.f32 %v420, %v426
    %v431 = vadd.f32 %v421, %v427
    %v432 = vadd.f32 %v422, %v428
    %s433 = sld [smem:[#allocation11 + $0x2]]
    %v434 = vstv %s433
    %v435 = vadd.f32 %v429, %v434
    %v436 = vadd.f32 %v430, %v434
    %v437 = vadd.f32 %v431, %v434
    %v438 = vadd.f32 %v432, %v434
    %s439 = scalar_lea.vmem [#allocation13], 64
    %440 = vst [vmem:[%s439] sm:$0xff] %v435
    %441 = vst [vmem:[%s439 + $0x8] sm:$0xff] %v436
    %442 = vst [vmem:[%s439 + $0x10] sm:$0xff] %v437
    %443 = vst [vmem:[%s439 + $0x18] sm:$0xff] %v438
    %s444 = sld [smem:[#allocation9 + $0x3]]
    %v445 = vstv %s444
    %v446 = vmul.f32 %v126, %v445
    %v447 = vmul.f32 %v127, %v445
    %v448 = vmul.f32 %v128, %v445
    %v449 = vmul.f32 %v129, %v445
    %s450 = sld [smem:[#allocation9 + $0x83]]
    %v451 = vstv %s450
    %v452 = vmul.f32 %v162, %v451
    %v453 = vmul.f32 %v163, %v451
    %v454 = vmul.f32 %v164, %v451
    %v455 = vmul.f32 %v165, %v451
    %v456 = vadd.f32 %v446, %v452
    %v457 = vadd.f32 %v447, %v453
    %v458 = vadd.f32 %v448, %v454
    %v459 = vadd.f32 %v449, %v455
    %s460 = sld [smem:[#allocation9 + $0x103]]
    %v461 = vstv %s460
    %v462 = vmul.f32 %v198, %v461
    %v463 = vmul.f32 %v199, %v461
    %v464 = vmul.f32 %v200, %v461
    %v465 = vmul.f32 %v201, %v461
    %v466 = vadd.f32 %v456, %v462
    %v467 = vadd.f32 %v457, %v463
    %v468 = vadd.f32 %v458, %v464
    %v469 = vadd.f32 %v459, %v465
    %s470 = sld [smem:[#allocation9 + $0x183]]
    %v471 = vstv %s470
    %v472 = vmul.f32 %v234, %v471
    %v473 = vmul.f32 %v235, %v471
    %v474 = vmul.f32 %v236, %v471
    %v475 = vmul.f32 %v237, %v471
    %v476 = vadd.f32 %v466, %v472
    %v477 = vadd.f32 %v467, %v473
    %v478 = vadd.f32 %v468, %v474
    %v479 = vadd.f32 %v469, %v475
    %s480 = sld [smem:[#allocation9 + $0x203]]
    %v481 = vstv %s480
    %v482 = vmul.f32 %v270, %v481
    %v483 = vmul.f32 %v271, %v481
    %v484 = vmul.f32 %v272, %v481
    %v485 = vmul.f32 %v273, %v481
    %v486 = vadd.f32 %v476, %v482
    %v487 = vadd.f32 %v477, %v483
    %v488 = vadd.f32 %v478, %v484
    %v489 = vadd.f32 %v479, %v485
    %s490 = sld [smem:[#allocation11 + $0x3]]
    %v491 = vstv %s490
    %v492 = vadd.f32 %v486, %v491
    %v493 = vadd.f32 %v487, %v491
    %v494 = vadd.f32 %v488, %v491
    %v495 = vadd.f32 %v489, %v491
    %s496 = scalar_lea.vmem [#allocation13], 96
    %497 = vst [vmem:[%s496] sm:$0xff] %v492
    %498 = vst [vmem:[%s496 + $0x8] sm:$0xff] %v493
    %499 = vst [vmem:[%s496 + $0x10] sm:$0xff] %v494
    %500 = vst [vmem:[%s496 + $0x18] sm:$0xff] %v495
    %s501 = sld [smem:[#allocation9 + $0x4]]
    %v502 = vstv %s501
    %v503 = vmul.f32 %v126, %v502
    %v504 = vmul.f32 %v127, %v502
    %v505 = vmul.f32 %v128, %v502
    %v506 = vmul.f32 %v129, %v502
    %s507 = sld [smem:[#allocation9 + $0x84]]
    %v508 = vstv %s507
    %v509 = vmul.f32 %v162, %v508
    %v510 = vmul.f32 %v163, %v508
    %v511 = vmul.f32 %v164, %v508
    %v512 = vmul.f32 %v165, %v508
    %v513 = vadd.f32 %v503, %v509
    %v514 = vadd.f32 %v504, %v510
    %v515 = vadd.f32 %v505, %v511
    %v516 = vadd.f32 %v506, %v512
    %s517 = sld [smem:[#allocation9 + $0x104]]
    %v518 = vstv %s517
    %v519 = vmul.f32 %v198, %v518
    %v520 = vmul.f32 %v199, %v518
    %v521 = vmul.f32 %v200, %v518
    %v522 = vmul.f32 %v201, %v518
    %v523 = vadd.f32 %v513, %v519
    %v524 = vadd.f32 %v514, %v520
    %v525 = vadd.f32 %v515, %v521
    %v526 = vadd.f32 %v516, %v522
    %s527 = sld [smem:[#allocation9 + $0x184]]
    %v528 = vstv %s527
    %v529 = vmul.f32 %v234, %v528
    %v530 = vmul.f32 %v235, %v528
    %v531 = vmul.f32 %v236, %v528
    %v532 = vmul.f32 %v237, %v528
    %v533 = vadd.f32 %v523, %v529
    %v534 = vadd.f32 %v524, %v530
    %v535 = vadd.f32 %v525, %v531
    %v536 = vadd.f32 %v526, %v532
    %s537 = sld [smem:[#allocation9 + $0x204]]
    %v538 = vstv %s537
    %v539 = vmul.f32 %v270, %v538
    %v540 = vmul.f32 %v271, %v538
    %v541 = vmul.f32 %v272, %v538
    %v542 = vmul.f32 %v273, %v538
    %v543 = vadd.f32 %v533, %v539
    %v544 = vadd.f32 %v534, %v540
    %v545 = vadd.f32 %v535, %v541
    %v546 = vadd.f32 %v536, %v542
    %s547 = sld [smem:[#allocation11 + $0x4]]
    %v548 = vstv %s547
    %v549 = vadd.f32 %v543, %v548
    %v550 = vadd.f32 %v544, %v548
    %v551 = vadd.f32 %v545, %v548
    %v552 = vadd.f32 %v546, %v548
    %s553 = scalar_lea.vmem [#allocation13], 128
    %554 = vst [vmem:[%s553] sm:$0xff] %v549
    %555 = vst [vmem:[%s553 + $0x8] sm:$0xff] %v550
    %556 = vst [vmem:[%s553 + $0x10] sm:$0xff] %v551
    %557 = vst [vmem:[%s553 + $0x18] sm:$0xff] %v552
    // Predicated region
    $region42: #{tpu_custom_call.1} parent=1 // pred_check
      _
    $region43: #{tpu_custom_call.1} parent=1 // pred_check_branch
      %559 = sbr.rel (0) target = $region45
    $region44: #{tpu_custom_call.1} parent=1 // pred_region
      %s561 = ssub.s32 2560, 2560
      %562 = vsyncadd [#allocation4], %s561
      %s563 = sshll.u32 [#allocation13], 4
      %s564 = int_to_ptr.vmem [resolvable:$true] %s563
      %569 = dma.vmem_to_hbm [thread:$0]  %s564, 2560, %s5, [#allocation4], 512, 512, 32
    $region45: #{tpu_custom_call.1} parent=1 // pred_fallthru
      _
    // Predicated region
    $region46: #{tpu_custom_call.1} parent=1 // pred_check
      _
    $region47: #{tpu_custom_call.1} parent=1 // pred_check_branch
      %571 = sbr.rel (0) target = $region49
    $region48: #{tpu_custom_call.1} parent=1 // pred_region
      %572 = dma.done [#allocation4], 2560
    $region49: #{tpu_custom_call.1} parent=1 // pred_fallthru
      _
    %573 = vsyncpa [#allocation3], 1
    %574 = vsyncpa [#allocation4], 1
    %575 = vsyncpa [#allocation5], 1
    %576 = vsyncpa [#allocation10], 1
    %577 = vsyncpa [#allocation6], 1
    %578 = vsyncpa [#allocation12], 1

</llo_original>
